<compile_context>
chip_gen: v7x
topology: tpu7x:2x2x1
jax: 0.10.0
libtpu: 0.0.40
codegen_flags: <defaults>
</compile_context>

<pallas_src>
import jax
import jax.numpy as jnp
from jax.experimental import pallas as pl
from jax.experimental.pallas import tpu as pltpu


def _encoder_lstm_kernel(x_ref, wih_ref, whh_ref, b_ref, hc_ref, xproj_sc):
    """One time-chunk of the LSTM forward.

    x_ref:    (Tc*B, E)   bf16 embedded tokens for this chunk (time-major rows)
    wih_ref:  (E, 4H)     bf16 input->gates weight (pre-transposed, [i,f,o,g])
    whh_ref:  (H, 4H)     bf16 hidden->gates weight (pre-transposed, [i,f,o,g])
    b_ref:    (1, 4H)     f32 combined bias (b_ih + b_hh), [i,f,o,g]
    hc_ref:   (2, B, H)   f32 output block, revisited across time chunks:
                          hc_ref[0] = h, hc_ref[1] = c (resident state)
    xproj_sc: (Tc, B, 4H) f32 scratch, hoisted input projection for this chunk
    """
    Tc, B, H4 = xproj_sc.shape
    H = H4 // 4
    t_chunk = pl.program_id(0)

    # --- Hoisted input projection: one bf16 MXU matmul over the whole chunk,
    #     f32 accumulation, bias folded in.  Off the serial critical path. ---
    proj = jnp.dot(x_ref[...], wih_ref[...],
                   preferred_element_type=jnp.float32) + b_ref[...]
    xproj_sc[...] = proj.reshape(Tc, B, H4)

    # --- Init resident state on the first time chunk. ---
    @pl.when(t_chunk == 0)
    def _():
        hc_ref[...] = jnp.zeros_like(hc_ref)

    w_hh = whh_ref[...]  # hoisted load, reused every step

    def step(t, carry):
        h, c = carry
        # Only the small (B,H)x(H,4H) matmul remains on the serial path.
        gates = xproj_sc[t] + jnp.dot(h.astype(w_hh.dtype), w_hh,
                                      preferred_element_type=jnp.float32)
        # Gate columns pre-permuted to [i, f, o, g]: sigmoid on 3H lanes,
        # tanh on H lanes (4H total instead of 8H).
        sig = jax.nn.sigmoid(gates[:, :3 * H])
        g = jnp.tanh(gates[:, 3 * H:])
        i = sig[:, 0 * H:1 * H]
        f = sig[:, 1 * H:2 * H]
        o = sig[:, 2 * H:3 * H]
        c_new = f * c + i * g
        h_new = o * jnp.tanh(c_new)
        return h_new, c_new

    h_last, c_last = jax.lax.fori_loop(
        0, Tc, step, (hc_ref[0], hc_ref[1]), unroll=min(Tc, 8))

    hc_ref[0] = h_last
    hc_ref[1] = c_last


def _largest_divisor_at_most(n, target):
    c = max(1, min(n, target))
    while n % c:
        c -= 1
    return c


def _permute_gate_rows(w):
    """Reorder PyTorch gate blocks [i, f, g, o] -> [i, f, o, g] along axis 0."""
    i, f, g, o = jnp.split(w, 4, axis=0)
    return jnp.concatenate([i, f, o, g], axis=0)


def encoder_forward(src, emb_table, w_ih, w_hh, b_ih, b_hh, *, time_chunk=None):
    """src: (T, B) int32 token ids.  Returns (hidden, cell), each (1, B, H) f32."""
    T, B = src.shape
    E = emb_table.shape[1]
    H = w_hh.shape[1]

    tc = _largest_divisor_at_most(T, time_chunk if time_chunk else 64)
    n_chunks = T // tc

    # Embedding lookup (gather) — glue outside the kernel; fed to the kernel
    # in bf16 to halve the HBM read.
    embedded = jnp.take(emb_table, src, axis=0).astype(jnp.bfloat16)  # (T,B,E)
    x_flat = embedded.reshape(T * B, E)                               # time-major rows

    # Gate-column permutation [i,f,g,o] -> [i,f,o,g] + transpose + bf16 cast.
    wih_t = jnp.transpose(_permute_gate_rows(w_ih)).astype(jnp.bfloat16)  # (E, 4H)
    whh_t = jnp.transpose(_permute_gate_rows(w_hh)).astype(jnp.bfloat16)  # (H, 4H)
    bias = _permute_gate_rows(b_ih + b_hh).reshape(1, 4 * H).astype(jnp.float32)

    # VMEM budget estimate (double-buffered inputs/outputs + scratch), with
    # headroom; clamped so it fits every chip generation (v7x: 64 MiB/TC).
    x_block_bytes = tc * B * E * 2
    w_bytes = (E + H) * 4 * H * 2 + 4 * H * 4
    xproj_bytes = tc * B * 4 * H * 4
    out_bytes = 2 * B * H * 4
    est = 2 * (x_block_bytes + w_bytes + out_bytes) + xproj_bytes
    vmem_limit = int(min(max(4 * est, 8 * 1024 * 1024), 64 * 1024 * 1024))

    hc = pl.pallas_call(
        _encoder_lstm_kernel,
        out_shape=jax.ShapeDtypeStruct((2, B, H), jnp.float32),
        grid=(n_chunks,),
        in_specs=[
            pl.BlockSpec((tc * B, E), lambda t: (t, 0)),      # x chunk (pipelined)
            pl.BlockSpec((E, 4 * H), lambda t: (0, 0)),       # W_ih^T (grid-invariant)
            pl.BlockSpec((H, 4 * H), lambda t: (0, 0)),       # W_hh^T (grid-invariant)
            pl.BlockSpec((1, 4 * H), lambda t: (0, 0)),       # bias   (grid-invariant)
        ],
        out_specs=pl.BlockSpec((2, B, H), lambda t: (0, 0, 0)),  # resident h/c state
        scratch_shapes=[pltpu.VMEM((tc, B, 4 * H), jnp.float32)],
        compiler_params=pltpu.CompilerParams(
            dimension_semantics=("arbitrary",),   # time recurrence is serial
            vmem_limit_bytes=vmem_limit),
    )(x_flat, wih_t, whh_t, bias)

    hidden = hc[0]
    cell = hc[1]
    # Match PyTorch nn.LSTM output shapes: (num_layers=1, B, H)
    return hidden[None, :, :], cell[None, :, :]


def _reference_forward(src, emb_table, w_ih, w_hh, b_ih, b_hh):
    """Pure-JAX f32 reference (lax.scan) mirroring PyTorch nn.LSTM semantics."""
    embedded = jnp.take(emb_table, src, axis=0)
    B = src.shape[1]
    H = w_hh.shape[1]

    def step(carry, x_t):
        h, c = carry
        gates = x_t @ w_ih.T + b_ih + h @ w_hh.T + b_hh
        i = jax.nn.sigmoid(gates[:, 0 * H:1 * H])
        f = jax.nn.sigmoid(gates[:, 1 * H:2 * H])
        g = jnp.tanh(gates[:, 2 * H:3 * H])
        o = jax.nn.sigmoid(gates[:, 3 * H:4 * H])
        c = f * c + i * g
        h = o * jnp.tanh(c)
        return (h, c), h

    init = (jnp.zeros((B, H), jnp.float32), jnp.zeros((B, H), jnp.float32))
    (h, c), _ = jax.lax.scan(step, init, embedded)
    return h[None], c[None]


if __name__ == "__main__":
    # Small shapes: vocab=16, embed=32, hidden=32, seq=8, batch=8
    INPUT_DIM, EMBED_DIM, HIDDEN_DIM = 16, 32, 32
    T, B = 8, 8

    key = jax.random.PRNGKey(0)
    k_src, k_emb, k_wih, k_whh, k_bih, k_bhh = jax.random.split(key, 6)

    src = jax.random.randint(k_src, (T, B), 0, INPUT_DIM, dtype=jnp.int32)

    scale = 1.0 / jnp.sqrt(HIDDEN_DIM)
    emb_table = jax.random.normal(k_emb, (INPUT_DIM, EMBED_DIM), jnp.float32)
    w_ih = scale * jax.random.normal(k_wih, (4 * HIDDEN_DIM, EMBED_DIM), jnp.float32)
    w_hh = scale * jax.random.normal(k_whh, (4 * HIDDEN_DIM, HIDDEN_DIM), jnp.float32)
    b_ih = scale * jax.random.normal(k_bih, (4 * HIDDEN_DIM,), jnp.float32)
    b_hh = scale * jax.random.normal(k_bhh, (4 * HIDDEN_DIM,), jnp.float32)

    # time_chunk=4 -> 2 pipelined time chunks, exercising the resident-state grid.
    hidden, cell = encoder_forward(src, emb_table, w_ih, w_hh, b_ih, b_hh,
                                   time_chunk=4)
    jax.block_until_ready((hidden, cell))

    h_ref, c_ref = _reference_forward(src, emb_table, w_ih, w_hh, b_ih, b_hh)
    assert hidden.shape == (1, B, HIDDEN_DIM) and cell.shape == (1, B, HIDDEN_DIM)
    # bf16 matmul inputs (f32 accumulation) vs. pure-f32 reference -> loose tol.
    assert jnp.allclose(hidden, h_ref, atol=5e-2, rtol=5e-2)
    assert jnp.allclose(cell, c_ref, atol=5e-2, rtol=5e-2)

    print("KERNEL_OK")
</pallas_src>

<mosaic_0001>
module attributes {stable_mosaic.version = 11 : i64} {
  func.func @_encoder_lstm_kernel(%arg0: i32, %arg1: memref<32x32xbf16, #tpu.memory_space<vmem>>, %arg2: memref<32x128xbf16, #tpu.memory_space<vmem>>, %arg3: memref<32x128xbf16, #tpu.memory_space<vmem>>, %arg4: memref<1x128xf32, #tpu.memory_space<vmem>>, %arg5: memref<2x8x32xf32, #tpu.memory_space<vmem>>, %arg6: memref<4x8x128xf32, #tpu.memory_space<vmem>>) attributes {dimension_semantics = [#tpu.dimension_semantics<arbitrary>], iteration_bounds = array<i64: 2>, scalar_prefetch = 0 : i64, scratch_operands = 1 : i64, tpu.core_type = #tpu.core_type<tc>, window_params = [{transform_indices = @transform_0, window_bounds = array<i64: 32, 32>}, {pipeline_mode = #tpu.pipeline_mode<synchronous>, transform_indices = @transform_1, window_bounds = array<i64: 32, 128>}, {pipeline_mode = #tpu.pipeline_mode<synchronous>, transform_indices = @transform_2, window_bounds = array<i64: 32, 128>}, {pipeline_mode = #tpu.pipeline_mode<synchronous>, transform_indices = @transform_3, window_bounds = array<i64: 1, 128>}, {pipeline_mode = #tpu.pipeline_mode<synchronous>, transform_indices = @transform_4, window_bounds = array<i64: 2, 8, 32>}]} {
    %c0 = arith.constant 0 : index
    %c0_0 = arith.constant 0 : index
    %0 = vector.load %arg1[%c0, %c0_0] : memref<32x32xbf16, #tpu.memory_space<vmem>>, vector<32x32xbf16>
    %c0_1 = arith.constant 0 : index
    %c0_2 = arith.constant 0 : index
    %1 = vector.load %arg2[%c0_1, %c0_2] : memref<32x128xbf16, #tpu.memory_space<vmem>>, vector<32x128xbf16>
    %cst = arith.constant dense<0.000000e+00> : vector<32x128xf32>
    %2 = tpu.matmul %0, %1, %cst {dimension_numbers = #tpu.dot_dimension_numbers<[1], [0], [0], [1], [0, 0, 1, 1], [], []>} : vector<32x32xbf16>, vector<32x128xbf16>, vector<32x128xf32> -> vector<32x128xf32>
    %c0_3 = arith.constant 0 : index
    %c0_4 = arith.constant 0 : index
    %3 = vector.load %arg4[%c0_3, %c0_4] : memref<1x128xf32, #tpu.memory_space<vmem>>, vector<1x128xf32>
    %4 = vector.broadcast %3 : vector<1x128xf32> to vector<32x128xf32>
    %5 = arith.addf %2, %4 : vector<32x128xf32>
    %6 = vector.shape_cast %5 : vector<32x128xf32> to vector<4x8x128xf32>
    %c0_5 = arith.constant 0 : index
    %c0_6 = arith.constant 0 : index
    %c0_7 = arith.constant 0 : index
    %7 = vector.load %arg6[%c0_5, %c0_6, %c0_7] : memref<4x8x128xf32, #tpu.memory_space<vmem>>, vector<4x8x128xf32>
    tpu.vector_store %arg6[%c0_5, %c0_6, %c0_7], %6 {strides = array<i32>} : memref<4x8x128xf32, #tpu.memory_space<vmem>>, vector<4x8x128xf32>,
    %c0_i32 = arith.constant 0 : i32
    %8 = arith.cmpi eq, %arg0, %c0_i32 : i32
    %9 = arith.extui %8 : i1 to i32
    %c0_i32_8 = arith.constant 0 : i32
    %10 = arith.cmpi ne, %9, %c0_i32_8 : i32
    scf.if %10 {
      %cst_39 = arith.constant 0.000000e+00 : f32
      %110 = vector.broadcast %cst_39 : f32 to vector<2x8x32xf32>
      %c0_40 = arith.constant 0 : index
      %c0_41 = arith.constant 0 : index
      %c0_42 = arith.constant 0 : index
      %111 = vector.load %arg5[%c0_40, %c0_41, %c0_42] : memref<2x8x32xf32, #tpu.memory_space<vmem>>, vector<2x8x32xf32>
      tpu.vector_store %arg5[%c0_40, %c0_41, %c0_42], %110 {strides = array<i32>} : memref<2x8x32xf32, #tpu.memory_space<vmem>>, vector<2x8x32xf32>,
    } else {
    }
    %c0_9 = arith.constant 0 : index
    %c0_10 = arith.constant 0 : index
    %11 = vector.load %arg3[%c0_9, %c0_10] : memref<32x128xbf16, #tpu.memory_space<vmem>>, vector<32x128xbf16>
    %c0_11 = arith.constant 0 : index
    %c0_12 = arith.constant 0 : index
    %c0_13 = arith.constant 0 : index
    %12 = vector.load %arg5[%c0_11, %c0_12, %c0_13] : memref<2x8x32xf32, #tpu.memory_space<vmem>>, vector<1x8x32xf32>
    %13 = vector.shape_cast %12 : vector<1x8x32xf32> to vector<8x32xf32>
    %c1 = arith.constant 1 : index
    %c0_14 = arith.constant 0 : index
    %c0_15 = arith.constant 0 : index
    %14 = vector.load %arg5[%c1, %c0_14, %c0_15] : memref<2x8x32xf32, #tpu.memory_space<vmem>>, vector<1x8x32xf32>
    %15 = vector.shape_cast %14 : vector<1x8x32xf32> to vector<8x32xf32>
    %c0_i32_16 = arith.constant 0 : i32
    %16 = arith.index_cast %c0_i32_16 : i32 to index
    %c0_17 = arith.constant 0 : index
    %c0_18 = arith.constant 0 : index
    %17 = vector.load %arg6[%16, %c0_17, %c0_18] : memref<4x8x128xf32, #tpu.memory_space<vmem>>, vector<1x8x128xf32>
    %18 = vector.shape_cast %17 : vector<1x8x128xf32> to vector<8x128xf32>
    %19 = arith.truncf %13 : vector<8x32xf32> to vector<8x32xbf16>
    %cst_19 = arith.constant dense<0.000000e+00> : vector<8x128xf32>
    %20 = tpu.matmul %19, %11, %cst_19 {dimension_numbers = #tpu.dot_dimension_numbers<[1], [0], [0], [1], [0, 0, 1, 1], [], []>} : vector<8x32xbf16>, vector<32x128xbf16>, vector<8x128xf32> -> vector<8x128xf32>
    %21 = arith.addf %18, %20 : vector<8x128xf32>
    %22 = vector.extract_strided_slice %21 {offsets = [0, 0], sizes = [8, 96], strides = [1, 1]} : vector<8x128xf32> to vector<8x96xf32>
    %23 = arith.negf %22 : vector<8x96xf32>
    %24 = math.exp %23 : vector<8x96xf32>
    %cst_20 = arith.constant 1.000000e+00 : f32
    %25 = vector.broadcast %cst_20 : f32 to vector<8x96xf32>
    %26 = arith.addf %25, %24 : vector<8x96xf32>
    %27 = arith.divf %25, %26 : vector<8x96xf32>
    %28 = vector.extract_strided_slice %21 {offsets = [0, 96], sizes = [8, 32], strides = [1, 1]} : vector<8x128xf32> to vector<8x32xf32>
    %29 = math.tanh %28 : vector<8x32xf32>
    %30 = vector.extract_strided_slice %27 {offsets = [0, 0], sizes = [8, 32], strides = [1, 1]} : vector<8x96xf32> to vector<8x32xf32>
    %31 = vector.extract_strided_slice %27 {offsets = [0, 32], sizes = [8, 32], strides = [1, 1]} : vector<8x96xf32> to vector<8x32xf32>
    %32 = vector.extract_strided_slice %27 {offsets = [0, 64], sizes = [8, 32], strides = [1, 1]} : vector<8x96xf32> to vector<8x32xf32>
    %33 = arith.mulf %31, %15 : vector<8x32xf32>
    %34 = arith.mulf %30, %29 : vector<8x32xf32>
    %35 = arith.addf %33, %34 : vector<8x32xf32>
    %36 = math.tanh %35 : vector<8x32xf32>
    %37 = arith.mulf %32, %36 : vector<8x32xf32>
    %c1_i32 = arith.constant 1 : i32
    %38 = arith.index_cast %c1_i32 : i32 to index
    %c0_21 = arith.constant 0 : index
    %c0_22 = arith.constant 0 : index
    %39 = vector.load %arg6[%38, %c0_21, %c0_22] : memref<4x8x128xf32, #tpu.memory_space<vmem>>, vector<1x8x128xf32>
    %40 = vector.shape_cast %39 : vector<1x8x128xf32> to vector<8x128xf32>
    %41 = arith.truncf %37 : vector<8x32xf32> to vector<8x32xbf16>
    %cst_23 = arith.constant dense<0.000000e+00> : vector<8x128xf32>
    %42 = tpu.matmul %41, %11, %cst_23 {dimension_numbers = #tpu.dot_dimension_numbers<[1], [0], [0], [1], [0, 0, 1, 1], [], []>} : vector<8x32xbf16>, vector<32x128xbf16>, vector<8x128xf32> -> vector<8x128xf32>
    %43 = arith.addf %40, %42 : vector<8x128xf32>
    %44 = vector.extract_strided_slice %43 {offsets = [0, 0], sizes = [8, 96], strides = [1, 1]} : vector<8x128xf32> to vector<8x96xf32>
    %45 = arith.negf %44 : vector<8x96xf32>
    %46 = math.exp %45 : vector<8x96xf32>
    %cst_24 = arith.constant 1.000000e+00 : f32
    %47 = vector.broadcast %cst_24 : f32 to vector<8x96xf32>
    %48 = arith.addf %47, %46 : vector<8x96xf32>
    %49 = arith.divf %47, %48 : vector<8x96xf32>
    %50 = vector.extract_strided_slice %43 {offsets = [0, 96], sizes = [8, 32], strides = [1, 1]} : vector<8x128xf32> to vector<8x32xf32>
    %51 = math.tanh %50 : vector<8x32xf32>
    %52 = vector.extract_strided_slice %49 {offsets = [0, 0], sizes = [8, 32], strides = [1, 1]} : vector<8x96xf32> to vector<8x32xf32>
    %53 = vector.extract_strided_slice %49 {offsets = [0, 32], sizes = [8, 32], strides = [1, 1]} : vector<8x96xf32> to vector<8x32xf32>
    %54 = vector.extract_strided_slice %49 {offsets = [0, 64], sizes = [8, 32], strides = [1, 1]} : vector<8x96xf32> to vector<8x32xf32>
    %55 = arith.mulf %53, %35 : vector<8x32xf32>
    %56 = arith.mulf %52, %51 : vector<8x32xf32>
    %57 = arith.addf %55, %56 : vector<8x32xf32>
    %58 = math.tanh %57 : vector<8x32xf32>
    %59 = arith.mulf %54, %58 : vector<8x32xf32>
    %c2_i32 = arith.constant 2 : i32
    %60 = arith.index_cast %c2_i32 : i32 to index
    %c0_25 = arith.constant 0 : index
    %c0_26 = arith.constant 0 : index
    %61 = vector.load %arg6[%60, %c0_25, %c0_26] : memref<4x8x128xf32, #tpu.memory_space<vmem>>, vector<1x8x128xf32>
    %62 = vector.shape_cast %61 : vector<1x8x128xf32> to vector<8x128xf32>
    %63 = arith.truncf %59 : vector<8x32xf32> to vector<8x32xbf16>
    %cst_27 = arith.constant dense<0.000000e+00> : vector<8x128xf32>
    %64 = tpu.matmul %63, %11, %cst_27 {dimension_numbers = #tpu.dot_dimension_numbers<[1], [0], [0], [1], [0, 0, 1, 1], [], []>} : vector<8x32xbf16>, vector<32x128xbf16>, vector<8x128xf32> -> vector<8x128xf32>
    %65 = arith.addf %62, %64 : vector<8x128xf32>
    %66 = vector.extract_strided_slice %65 {offsets = [0, 0], sizes = [8, 96], strides = [1, 1]} : vector<8x128xf32> to vector<8x96xf32>
    %67 = arith.negf %66 : vector<8x96xf32>
    %68 = math.exp %67 : vector<8x96xf32>
    %cst_28 = arith.constant 1.000000e+00 : f32
    %69 = vector.broadcast %cst_28 : f32 to vector<8x96xf32>
    %70 = arith.addf %69, %68 : vector<8x96xf32>
    %71 = arith.divf %69, %70 : vector<8x96xf32>
    %72 = vector.extract_strided_slice %65 {offsets = [0, 96], sizes = [8, 32], strides = [1, 1]} : vector<8x128xf32> to vector<8x32xf32>
    %73 = math.tanh %72 : vector<8x32xf32>
    %74 = vector.extract_strided_slice %71 {offsets = [0, 0], sizes = [8, 32], strides = [1, 1]} : vector<8x96xf32> to vector<8x32xf32>
    %75 = vector.extract_strided_slice %71 {offsets = [0, 32], sizes = [8, 32], strides = [1, 1]} : vector<8x96xf32> to vector<8x32xf32>
    %76 = vector.extract_strided_slice %71 {offsets = [0, 64], sizes = [8, 32], strides = [1, 1]} : vector<8x96xf32> to vector<8x32xf32>
    %77 = arith.mulf %75, %57 : vector<8x32xf32>
    %78 = arith.mulf %74, %73 : vector<8x32xf32>
    %79 = arith.addf %77, %78 : vector<8x32xf32>
    %80 = math.tanh %79 : vector<8x32xf32>
    %81 = arith.mulf %76, %80 : vector<8x32xf32>
    %c3_i32 = arith.constant 3 : i32
    %82 = arith.index_cast %c3_i32 : i32 to index
    %c0_29 = arith.constant 0 : index
    %c0_30 = arith.constant 0 : index
    %83 = vector.load %arg6[%82, %c0_29, %c0_30] : memref<4x8x128xf32, #tpu.memory_space<vmem>>, vector<1x8x128xf32>
    %84 = vector.shape_cast %83 : vector<1x8x128xf32> to vector<8x128xf32>
    %85 = arith.truncf %81 : vector<8x32xf32> to vector<8x32xbf16>
    %cst_31 = arith.constant dense<0.000000e+00> : vector<8x128xf32>
    %86 = tpu.matmul %85, %11, %cst_31 {dimension_numbers = #tpu.dot_dimension_numbers<[1], [0], [0], [1], [0, 0, 1, 1], [], []>} : vector<8x32xbf16>, vector<32x128xbf16>, vector<8x128xf32> -> vector<8x128xf32>
    %87 = arith.addf %84, %86 : vector<8x128xf32>
    %88 = vector.extract_strided_slice %87 {offsets = [0, 0], sizes = [8, 96], strides = [1, 1]} : vector<8x128xf32> to vector<8x96xf32>
    %89 = arith.negf %88 : vector<8x96xf32>
    %90 = math.exp %89 : vector<8x96xf32>
    %cst_32 = arith.constant 1.000000e+00 : f32
    %91 = vector.broadcast %cst_32 : f32 to vector<8x96xf32>
    %92 = arith.addf %91, %90 : vector<8x96xf32>
    %93 = arith.divf %91, %92 : vector<8x96xf32>
    %94 = vector.extract_strided_slice %87 {offsets = [0, 96], sizes = [8, 32], strides = [1, 1]} : vector<8x128xf32> to vector<8x32xf32>
    %95 = math.tanh %94 : vector<8x32xf32>
    %96 = vector.extract_strided_slice %93 {offsets = [0, 0], sizes = [8, 32], strides = [1, 1]} : vector<8x96xf32> to vector<8x32xf32>
    %97 = vector.extract_strided_slice %93 {offsets = [0, 32], sizes = [8, 32], strides = [1, 1]} : vector<8x96xf32> to vector<8x32xf32>
    %98 = vector.extract_strided_slice %93 {offsets = [0, 64], sizes = [8, 32], strides = [1, 1]} : vector<8x96xf32> to vector<8x32xf32>
    %99 = arith.mulf %97, %79 : vector<8x32xf32>
    %100 = arith.mulf %96, %95 : vector<8x32xf32>
    %101 = arith.addf %99, %100 : vector<8x32xf32>
    %102 = math.tanh %101 : vector<8x32xf32>
    %103 = arith.mulf %98, %102 : vector<8x32xf32>
    %c4_i32 = arith.constant 4 : i32
    %c0_33 = arith.constant 0 : index
    %c0_34 = arith.constant 0 : index
    %c0_35 = arith.constant 0 : index
    %104 = vector.load %arg5[%c0_33, %c0_34, %c0_35] : memref<2x8x32xf32, #tpu.memory_space<vmem>>, vector<1x8x32xf32>
    %105 = vector.shape_cast %104 : vector<1x8x32xf32> to vector<8x32xf32>
    %106 = vector.shape_cast %103 : vector<8x32xf32> to vector<1x8x32xf32>
    tpu.vector_store %arg5[%c0_33, %c0_34, %c0_35], %106 {strides = array<i32>} : memref<2x8x32xf32, #tpu.memory_space<vmem>>, vector<1x8x32xf32>,
    %c1_36 = arith.constant 1 : index
    %c0_37 = arith.constant 0 : index
    %c0_38 = arith.constant 0 : index
    %107 = vector.load %arg5[%c1_36, %c0_37, %c0_38] : memref<2x8x32xf32, #tpu.memory_space<vmem>>, vector<1x8x32xf32>
    %108 = vector.shape_cast %107 : vector<1x8x32xf32> to vector<8x32xf32>
    %109 = vector.shape_cast %101 : vector<8x32xf32> to vector<1x8x32xf32>
    tpu.vector_store %arg5[%c1_36, %c0_37, %c0_38], %109 {strides = array<i32>} : memref<2x8x32xf32, #tpu.memory_space<vmem>>, vector<1x8x32xf32>,
    return
  }
  func.func @transform_0(%arg0: i32) -> (i32, i32) {
    %c0_i32 = arith.constant 0 : i32
    %c0_i32_0 = arith.constant 0 : i32
    return %arg0, %c0_i32 : i32, i32
  }
  func.func @transform_1(%arg0: i32) -> (i32, i32) {
    %c0_i32 = arith.constant 0 : i32
    %c0_i32_0 = arith.constant 0 : i32
    %c0_i32_1 = arith.constant 0 : i32
    return %c0_i32, %c0_i32_0 : i32, i32
  }
  func.func @transform_2(%arg0: i32) -> (i32, i32) {
    %c0_i32 = arith.constant 0 : i32
    %c0_i32_0 = arith.constant 0 : i32
    %c0_i32_1 = arith.constant 0 : i32
    return %c0_i32, %c0_i32_0 : i32, i32
  }
  func.func @transform_3(%arg0: i32) -> (i32, i32) {
    %c0_i32 = arith.constant 0 : i32
    %c0_i32_0 = arith.constant 0 : i32
    %c0_i32_1 = arith.constant 0 : i32
    return %c0_i32, %c0_i32_0 : i32, i32
  }
  func.func @transform_4(%arg0: i32) -> (i32, i32, i32) {
    %c0_i32 = arith.constant 0 : i32
    %c0_i32_0 = arith.constant 0 : i32
    %c0_i32_1 = arith.constant 0 : i32
    %c0_i32_2 = arith.constant 0 : i32
    return %c0_i32, %c0_i32_0, %c0_i32_1 : i32, i32, i32
  }
}

</mosaic_0001>

<llo_original>
// kernel: tpu_custom_call.1
$region0: #{tpu_custom_call.1}
  #allocation0 [shape = 'u32[]', space=smem, size = 0x4, offset = 0x4, fixed_abs, tag = 'smem constant byte address 0x4 - core index']
  #allocation1 [shape = 'u32[144,128]{1,0:T(1,128)}', space=vmem, size = 0x12000, scoped, tag = 'internal scratch']
  #allocation2 [shape = 'f32[4,8,128]{2,1,0:T(8,128)}', space=vmem, size = 0x4000, scoped, tag = 'scratch operand']
  %s0 = inlined_call_operand.vmem [shape: bf16[64,32], index: 0, kind: input, shape index: {}]
  %s1 = inlined_call_operand.vmem [shape: bf16[32,128], index: 1, kind: input, shape index: {}]
  %s2 = inlined_call_operand.vmem [shape: bf16[32,128], index: 2, kind: input, shape index: {}]
  %s3 = inlined_call_operand.vmem [shape: f32[1,128], index: 3, kind: input, shape index: {}]
  %s4 = inlined_call_operand.hbm [shape: f32[2,8,32], index: 4, kind: output, shape index: {}]
  %s5 = sld [smem:[#allocation0]]
  $region53: #{tpu_custom_call.1} parent=0
    _
  %s7 = ssub.s32 1, %s5
  %s8 = scalar_select 0, %s7, %s5
  $region1: #{tpu_custom_call.1} parent=0
    #allocation3 [shape = 'u8[8192]{0}', space=vmem, size = 0x2000, scoped, tag = 'output window, operand 0, single buffered']
    #allocation4 [shape = 's32[2]{0}', space=sflag, size = 0x8, scoped, tag = 'scoped memory for tpu_custom_call.1']
    %9 = vsyncpa [#allocation4], 0
    loop: start=0, step=1, limit=4
    $region2: #{tpu_custom_call.1} parent=1 // loop_pre_header
      _
    $region3: #{tpu_custom_call.1} parent=1 // loop_header
      %s11 = sphi 0, %s15
      %p12 = scmp.ge.s32.totalorder %s11, 4
      %s21 = sphi 0, %s23
      %s24 = sphi 0, %s21
      %s25 = sphi 0, %s24
      %s41 = sphi 0, %s25
      %s45 = sphi 0, %s45
      %s47 = sphi 0, %s45
      %s48 = sphi 0, %s47
      %s62 = sphi 0, %s48
      %s66 = sphi 0, %s66
      %s68 = sphi 0, %s66
      %s69 = sphi 0, %s68
      %s83 = sphi 0, %s69
      %s87 = sphi 0, %s87
      %s89 = sphi 0, %s87
      %s90 = sphi 0, %s89
      %s104 = sphi 0, %s90
      %s108 = sphi 0, %s108
      %s110 = sphi 0, %s108
      %s111 = sphi 0, %s110
      %s125 = sphi 0, %s111
    $region4: #{tpu_custom_call.1} parent=1 // loop_header_branch
      %14 = sbr.rel (%p12) target = $region8
    $region5: #{tpu_custom_call.1} parent=1 // loop_body
      %s16 = ssub.s32 %s11, 1
      %s17 = ssub.s32 %s11, 2
      %s18 = sadd.s32 %s11, 1
      %s19 = ssub.s32 %s11, %s18
      %p20 = scmp.eq.s32.totalorder %s19, 0
      %s22 = sadd.s32 %s21, 1
      %s23 = scalar_select %p20, %s21, %s22
      %p26 = pneg %p20
      %p27 = scmp.eq.s32.totalorder %s11, 1
      %p28 = por %p26, %p27
      %p29 = scmp.ne.s32.totalorder %s21, %s24
      %p30 = scmp.eq.s32.totalorder %s11, 0
      %p31 = por %p29, %p30
      %p32 = scmp.ne.s32.totalorder %s21, %s24
      %p33 = scmp.eq.s32.totalorder %s16, 1
      %p34 = por %p32, %p33
      %p35 = scmp.ne.s32.totalorder %s24, %s25
      %p36 = scmp.eq.s32.totalorder %s16, 0
      %p37 = por %p35, %p36
      %p38 = scmp.ne.s32.totalorder %s24, %s25
      %p39 = scmp.eq.s32.totalorder %s17, 1
      %p40 = por %p38, %p39
      %p42 = scmp.ne.s32.totalorder %s25, %s41
      %p43 = scmp.eq.s32.totalorder %s17, 0
      %p44 = por %p42, %p43
      %s46 = sadd.s32 %s45, 1
      %p49 = scmp.eq.s32.totalorder %s11, 1
      %p50 = scmp.ne.s32.totalorder %s45, %s47
      %p51 = scmp.eq.s32.totalorder %s11, 0
      %p52 = por %p50, %p51
      %p53 = scmp.ne.s32.totalorder %s45, %s47
      %p54 = scmp.eq.s32.totalorder %s16, 1
      %p55 = por %p53, %p54
      %p56 = scmp.ne.s32.totalorder %s47, %s48
      %p57 = scmp.eq.s32.totalorder %s16, 0
      %p58 = por %p56, %p57
      %p59 = scmp.ne.s32.totalorder %s47, %s48
      %p60 = scmp.eq.s32.totalorder %s17, 1
      %p61 = por %p59, %p60
      %p63 = scmp.ne.s32.totalorder %s48, %s62
      %p64 = scmp.eq.s32.totalorder %s17, 0
      %p65 = por %p63, %p64
      %s67 = sadd.s32 %s66, 1
      %p70 = scmp.eq.s32.totalorder %s11, 1
      %p71 = scmp.ne.s32.totalorder %s66, %s68
      %p72 = scmp.eq.s32.totalorder %s11, 0
      %p73 = por %p71, %p72
      %p74 = scmp.ne.s32.totalorder %s66, %s68
      %p75 = scmp.eq.s32.totalorder %s16, 1
      %p76 = por %p74, %p75
      %p77 = scmp.ne.s32.totalorder %s68, %s69
      %p78 = scmp.eq.s32.totalorder %s16, 0
      %p79 = por %p77, %p78
      %p80 = scmp.ne.s32.totalorder %s68, %s69
      %p81 = scmp.eq.s32.totalorder %s17, 1
      %p82 = por %p80, %p81
      %p84 = scmp.ne.s32.totalorder %s69, %s83
      %p85 = scmp.eq.s32.totalorder %s17, 0
      %p86 = por %p84, %p85
      %s88 = sadd.s32 %s87, 1
      %p91 = scmp.eq.s32.totalorder %s11, 1
      %p92 = scmp.ne.s32.totalorder %s87, %s89
      %p93 = scmp.eq.s32.totalorder %s11, 0
      %p94 = por %p92, %p93
      %p95 = scmp.ne.s32.totalorder %s87, %s89
      %p96 = scmp.eq.s32.totalorder %s16, 1
      %p97 = por %p95, %p96
      %p98 = scmp.ne.s32.totalorder %s89, %s90
      %p99 = scmp.eq.s32.totalorder %s16, 0
      %p100 = por %p98, %p99
      %p101 = scmp.ne.s32.totalorder %s89, %s90
      %p102 = scmp.eq.s32.totalorder %s17, 1
      %p103 = por %p101, %p102
      %p105 = scmp.ne.s32.totalorder %s90, %s104
      %p106 = scmp.eq.s32.totalorder %s17, 0
      %p107 = por %p105, %p106
      %s109 = sadd.s32 %s108, 1
      %p112 = scmp.eq.s32.totalorder %s11, 1
      %p113 = scmp.ne.s32.totalorder %s108, %s110
      %p114 = scmp.eq.s32.totalorder %s11, 0
      %p115 = por %p113, %p114
      %p116 = scmp.ne.s32.totalorder %s108, %s110
      %p117 = scmp.eq.s32.totalorder %s16, 1
      %p118 = por %p116, %p117
      %p119 = scmp.ne.s32.totalorder %s110, %s111
      %p120 = scmp.eq.s32.totalorder %s16, 0
      %p121 = por %p119, %p120
      %p122 = scmp.ne.s32.totalorder %s110, %s111
      %p123 = scmp.eq.s32.totalorder %s17, 1
      %p124 = por %p122, %p123
      %p126 = scmp.ne.s32.totalorder %s111, %s125
      %p127 = scmp.eq.s32.totalorder %s17, 0
      %p128 = por %p126, %p127
      %p129 = scmp.le.s32.totalorder 1, %s11
      %p130 = scmp.lt.s32.totalorder %s11, 3
      %p131 = pnand %p129, %p130
      %p132 = pneg %p131
      // Predicated region
      $region9: #{tpu_custom_call.1} parent=5 // pred_check
        _
      $region10: #{tpu_custom_call.1} parent=5 // pred_check_branch
        %134 = sbr.rel (%p131) target = $region12
      $region11: #{tpu_custom_call.1} parent=5 // pred_region
        %s135 = ssub.s32 %s11, 1
        // Predicated region
        $region13: #{tpu_custom_call.1} parent=11 // pred_check
          %p136 = pneg %p58
        $region14: #{tpu_custom_call.1} parent=11 // pred_check_branch
          %138 = sbr.rel (%p136) target = $region16
        $region15: #{tpu_custom_call.1} parent=11 // pred_region
          _
        $region16: #{tpu_custom_call.1} parent=11 // pred_fallthru
          _
        // Predicated region
        $region17: #{tpu_custom_call.1} parent=11 // pred_check
          %p139 = pneg %p79
        $region18: #{tpu_custom_call.1} parent=11 // pred_check_branch
          %141 = sbr.rel (%p139) target = $region20
        $region19: #{tpu_custom_call.1} parent=11 // pred_region
          _
        $region20: #{tpu_custom_call.1} parent=11 // pred_fallthru
          _
        // Predicated region
        $region21: #{tpu_custom_call.1} parent=11 // pred_check
          %p142 = pneg %p100
        $region22: #{tpu_custom_call.1} parent=11 // pred_check_branch
          %144 = sbr.rel (%p142) target = $region24
        $region23: #{tpu_custom_call.1} parent=11 // pred_region
          _
        $region24: #{tpu_custom_call.1} parent=11 // pred_fallthru
          _
      $region12: #{tpu_custom_call.1} parent=5 // pred_fallthru
        _
      %p145 = scmp.lt.s32.totalorder %s11, 2
      // Predicated region
      $region25: #{tpu_custom_call.1} parent=5 // pred_check
        %p146 = pneg %p145
      $region26: #{tpu_custom_call.1} parent=5 // pred_check_branch
        %148 = sbr.rel (%p146) target = $region28
      $region27: #{tpu_custom_call.1} parent=5 // pred_region
        // Predicated region
        $region29: #{tpu_custom_call.1} parent=27 // pred_check
          %p149 = pneg %p31
        $region30: #{tpu_custom_call.1} parent=27 // pred_check_branch
          %151 = sbr.rel (%p149) target = $region32
        $region31: #{tpu_custom_call.1} parent=27 // pred_region
          %s152 = smul.u32 4, %s11
          %p153 = scmp.lt.s32.totalorder %s152, 7
          %s154 = scalar_select %p153, %s152, 7
          %s155 = smul.addr %s154, 4
          %s156 = scalar_lea.vmem %s0, %s155
          %s157 = smul.u32 4, %s11
        $region32: #{tpu_custom_call.1} parent=27 // pred_fallthru
          _
      $region28: #{tpu_custom_call.1} parent=5 // pred_fallthru
        _
      %p158 = scmp.le.s32.totalorder 1, %s11
      %p159 = scmp.lt.s32.totalorder %s11, 3
      %p160 = pnand %p158, %p159
      %p161 = pneg %p160
      // Predicated region
      $region33: #{tpu_custom_call.1} parent=5 // pred_check
        _
      $region34: #{tpu_custom_call.1} parent=5 // pred_check_branch
        %163 = sbr.rel (%p160) target = $region36
      $region35: #{tpu_custom_call.1} parent=5 // pred_region
        %s164 = ssub.s32 %s11, 1
        %s165 = smul.u32 4, %s16
        %p166 = scmp.lt.s32.totalorder %s165, 7
        %s167 = scalar_select %p166, %s165, 7
        %s168 = smul.addr %s167, 4
        %s169 = scalar_lea.vmem %s0, %s168
        %p170 = pneg %p37
        %p171 = pneg %p34
        %p172 = pneg %p58
        %p173 = pneg %p55
        %p174 = pneg %p79
        %p175 = pneg %p76
        %p176 = pneg %p100
        %p177 = pneg %p97
        %p178 = pneg %p121
        %p179 = pneg %p118
        %s180 = smul.u32 4, %s16
        %p181 = scmp.lt.s32.totalorder %s180, 7
        %s182 = scalar_select %p181, %s180, 7
        %s183 = smul.addr %s182, 4
        %s184 = scalar_lea.vmem %s0, %s183
        %s185 = smul.u32 4, %s16
        %v187 = vld [vmem:[%s184] sm:$0xf]
        %v188 = vld [vmem:[%s184 + $0x4] sm:$0xf]
        %v189 = vld [vmem:[%s184 + $0x8] sm:$0xf]
        %v190 = vld [vmem:[%s184 + $0xc] sm:$0xf]
        %v191 = vld [vmem:[%s1] sm:$0xf]
        %v192 = vld [vmem:[%s1 + $0x4] sm:$0xf]
        %v193 = vld [vmem:[%s1 + $0x8] sm:$0xf]
        %v194 = vld [vmem:[%s1 + $0xc] sm:$0xf]
        %v195 = vld [vmem:[%s3] sm:$0x1]
        %v197 = vlaneseq
        %v198 = vshrl.u32 %v197, 7
        %v199 = vsub.s32 0, %v198
        %v200 = vrot.slane %v195, %v199
        %v206 = vunpack.c.l.b16 %v187
        %v207 = vunpack.c.l.b16 %v188
        %v208 = vunpack.c.l.b16 %v189
        %v209 = vunpack.c.l.b16 %v190
        %v210 = vpack.c.b16 %v207, %v206
        %v211 = vpack.c.b16 %v209, %v208
        %v216 = vunpack.c.l.b16 %v191
        %v217 = vunpack.c.l.b16 %v192
        %v218 = vunpack.c.l.b16 %v193
        %v219 = vunpack.c.l.b16 %v194
        %v220 = vpack.c.b16 %v217, %v216
        %v221 = vpack.c.b16 %v219, %v218
        %vm224 = vcmask 261120
        %v226 = vsel %vm224, %v210, 0
        %v229 = vsel %vm224, %v211, 0
        %231 = vmatprep.subr.bf16.mxu0 0
        %232 = vmatpush1.bf16.msra.mxu0 %v220
        %233 = vmatprep.subr.bf16.mxu0 0
        %234 = vmatpush1.bf16.msra.mxu0 %v221
        %235 = vmatprep.subr.bf16.mxu0 0
        %236 = vmatpush1.bf16.msra.mxu0 0
        %237 = vmatprep.subr.bf16.mxu0 0
        %238 = vmatpush1.bf16.msra.mxu0 0
        %239 = vmatprep.subr.bf16.mxu0 0
        %240 = vmatpush1.bf16.msra.mxu0 0
        %241 = vmatprep.subr.bf16.mxu0 0
        %242 = vmatpush1.bf16.msra.mxu0 0
        %243 = vmatprep.subr.bf16.mxu0 0
        %244 = vmatpush1.bf16.msra.mxu0 0
        %245 = vmatprep.subr.bf16.mxu0 0
        %246 = vmatpush1.bf16.msra.mxu0 0
        %247 = vmatprep.subr.bf16.mxu0 0
        %248 = vmatpush1.bf16.msra.mxu0 0
        %249 = vmatprep.subr.bf16.mxu0 0
        %250 = vmatpush1.bf16.msra.mxu0 0
        %251 = vmatprep.subr.bf16.mxu0 0
        %252 = vmatpush1.bf16.msra.mxu0 0
        %253 = vmatprep.subr.bf16.mxu0 0
        %254 = vmatpush1.bf16.msra.mxu0 0
        %255 = vmatprep.subr.bf16.mxu0 0
        %256 = vmatpush1.bf16.msra.mxu0 0
        %257 = vmatprep.subr.bf16.mxu0 0
        %258 = vmatpush1.bf16.msra.mxu0 0
        %259 = vmatprep.subr.bf16.mxu0 0
        %260 = vmatpush1.bf16.msra.mxu0 0
        %261 = vmatprep.subr.bf16.mxu0 0
        %262 = vmatpush1.bf16.msra.mxu0 0
        %263 = vmatprep.mubr.bf16.mxu0 0
        %264 = vmatmul.mubr.bf16.gmra.mrb[0].mxu0 %v226
        %v265 = vpop.f32.mrb[0].mxu0
        %v266 = vadd.f32 %v200, %v265
        %v267 = vpop.f32.mrb[0].mxu0
        %v268 = vpop.f32.mrb[0].mxu0
        %v269 = vadd.f32 %v200, %v268
        %v270 = vpop.f32.mrb[0].mxu0
        %271 = vmatprep.mubr.bf16.mxu0 0
        %272 = vmatmul.mubr.bf16.gmra.mrb[0].mxu0 %v229
        %v273 = vpop.f32.mrb[0].mxu0
        %v274 = vadd.f32 %v200, %v273
        %v275 = vpop.f32.mrb[0].mxu0
        %v276 = vpop.f32.mrb[0].mxu0
        %v277 = vadd.f32 %v200, %v276
        %v278 = vpop.f32.mrb[0].mxu0
        %279 = vdwg.mxu0
        %280 = vst [vmem:[#allocation2] sm:$0xff] %v266
        %281 = vst [vmem:[#allocation2 + $0x8] sm:$0xff] %v269
        %282 = vst [vmem:[#allocation2 + $0x10] sm:$0xff] %v274
        %283 = vst [vmem:[#allocation2 + $0x18] sm:$0xff] %v277
        %p284 = scmp.eq.s32.totalorder %s16, 0
        // Predicated region
        $region37: #{tpu_custom_call.1} parent=35 // pred_check
          %p285 = pneg %p284
        $region38: #{tpu_custom_call.1} parent=35 // pred_check_branch
          %287 = sbr.rel (%p285) target = $region40
        $region39: #{tpu_custom_call.1} parent=35 // pred_region
          %288 = vst.msk [vmem:[#allocation3] sm:$0xff] %vm224, 0.0
          %289 = vst.msk [vmem:[#allocation3 + $0x8] sm:$0xff] %vm224, 0.0
        $region40: #{tpu_custom_call.1} parent=35 // pred_fallthru
          _
        %v290 = vld [vmem:[%s2] sm:$0xf]
        %v291 = vld [vmem:[%s2 + $0x4] sm:$0xf]
        %v292 = vld [vmem:[%s2 + $0x8] sm:$0xf]
        %v293 = vld [vmem:[%s2 + $0xc] sm:$0xf]
        %v294 = vld [vmem:[#allocation3] sm:$0xff]
        %s295 = scalar_lea.vmem [#allocation3], 8
        %v296 = vld [vmem:[%s295] sm:$0xff]
        %v297 = vld [vmem:[#allocation2] sm:$0xff]
        %v298 = vpack.c.bf16 %v294, %v294
        %v303 = vunpack.c.l.b16 %v290
        %v304 = vunpack.c.l.b16 %v291
        %v305 = vunpack.c.l.b16 %v292
        %v306 = vunpack.c.l.b16 %v293
        %v307 = vpack.c.b16 %v304, %v303
        %v308 = vpack.c.b16 %v306, %v305
        %v312 = vsel %vm224, %v298, 0
        %314 = vmatprep.subr.bf16.mxu0 0
        %315 = vmatpush1.bf16.msra.mxu0 %v307
        %316 = vmatprep.subr.bf16.mxu0 0
        %317 = vmatpush1.bf16.msra.mxu0 %v308
        %318 = vmatprep.subr.bf16.mxu0 0
        %319 = vmatpush1.bf16.msra.mxu0 0
        %320 = vmatprep.subr.bf16.mxu0 0
        %321 = vmatpush1.bf16.msra.mxu0 0
        %322 = vmatprep.subr.bf16.mxu0 0
        %323 = vmatpush1.bf16.msra.mxu0 0
        %324 = vmatprep.subr.bf16.mxu0 0
        %325 = vmatpush1.bf16.msra.mxu0 0
        %326 = vmatprep.subr.bf16.mxu0 0
        %327 = vmatpush1.bf16.msra.mxu0 0
        %328 = vmatprep.subr.bf16.mxu0 0
        %329 = vmatpush1.bf16.msra.mxu0 0
        %330 = vmatprep.subr.bf16.mxu0 0
        %331 = vmatpush1.bf16.msra.mxu0 0
        %332 = vmatprep.subr.bf16.mxu0 0
        %333 = vmatpush1.bf16.msra.mxu0 0
        %334 = vmatprep.subr.bf16.mxu0 0
        %335 = vmatpush1.bf16.msra.mxu0 0
        %336 = vmatprep.subr.bf16.mxu0 0
        %337 = vmatpush1.bf16.msra.mxu0 0
        %338 = vmatprep.subr.bf16.mxu0 0
        %339 = vmatpush1.bf16.msra.mxu0 0
        %340 = vmatprep.subr.bf16.mxu0 0
        %341 = vmatpush1.bf16.msra.mxu0 0
        %342 = vmatprep.subr.bf16.mxu0 0
        %343 = vmatpush1.bf16.msra.mxu0 0
        %344 = vmatprep.subr.bf16.mxu0 0
        %345 = vmatpush1.bf16.msra.mxu0 0
        %346 = vmatprep.mubr.bf16.mxu0 0
        %347 = vmatmul.mubr.bf16.gmra.mrb[0].mxu0 %v312
        %v348 = vpop.f32.mrb[0].mxu0
        %v349 = vadd.f32 0.0, %v348
        %v350 = vpop.f32.mrb[0].mxu0
        %v351 = vpop.f32.mrb[0].mxu0
        %v352 = vpop.f32.mrb[0].mxu0
        %353 = vdwg.mxu0
        %v354 = vadd.f32 %v297, %v349
        %v355 = vxor.u32 %v354, 2147483648
        %v356 = vmul.f32 %v355, 1.442695
        %v357 = vpow.pop %v356
        %v358 = vadd.f32 %v357, 1.0
        %v359 = vrcp.pop %v358
        %v360 = vmul.f32 1.0, %v359
        %v361 = vtanh.pop %v354
        %363 = vrot.lane.b32.xlu0 %v296, 32
        %v364 = vpop.permute.xlu0 %363
        %v366 = vmul.f32 %v360, %v364
        %368 = vrot.lane.b32.xlu0 %v361, 32
        %v369 = vpop.permute.xlu0 %368
        %v371 = vmul.f32 %v360, %v369
        %373 = vrot.lane.b32.xlu0 %v371, 32
        %v374 = vpop.permute.xlu0 %373
        %v376 = vadd.f32 %v366, %v374
        %v377 = vtanh.pop %v376
        %379 = vrot.lane.b32.xlu0 %v377, 32
        %v380 = vpop.permute.xlu0 %379
        %v382 = vmul.f32 %v360, %v380
        %s383 = scalar_lea.vmem [#allocation2], 8
        %v384 = vld [vmem:[%s383] sm:$0xff]
        %v385 = vpack.c.bf16 %v382, %v382
        %387 = vrot.lane.b32.xlu0 %v385, 64
        %v388 = vpop.permute.xlu0 %387
        %v390 = vsel %vm224, %v388, 0
        %392 = vmatprep.subr.bf16.mxu0 0
        %393 = vmatpush1.bf16.msra.mxu0 %v307
        %394 = vmatprep.subr.bf16.mxu0 0
        %395 = vmatpush1.bf16.msra.mxu0 %v308
        %396 = vmatprep.subr.bf16.mxu0 0
        %397 = vmatpush1.bf16.msra.mxu0 0
        %398 = vmatprep.subr.bf16.mxu0 0
        %399 = vmatpush1.bf16.msra.mxu0 0
        %400 = vmatprep.subr.bf16.mxu0 0
        %401 = vmatpush1.bf16.msra.mxu0 0
        %402 = vmatprep.subr.bf16.mxu0 0
        %403 = vmatpush1.bf16.msra.mxu0 0
        %404 = vmatprep.subr.bf16.mxu0 0
        %405 = vmatpush1.bf16.msra.mxu0 0
        %406 = vmatprep.subr.bf16.mxu0 0
        %407 = vmatpush1.bf16.msra.mxu0 0
        %408 = vmatprep.subr.bf16.mxu0 0
        %409 = vmatpush1.bf16.msra.mxu0 0
        %410 = vmatprep.subr.bf16.mxu0 0
        %411 = vmatpush1.bf16.msra.mxu0 0
        %412 = vmatprep.subr.bf16.mxu0 0
        %413 = vmatpush1.bf16.msra.mxu0 0
        %414 = vmatprep.subr.bf16.mxu0 0
        %415 = vmatpush1.bf16.msra.mxu0 0
        %416 = vmatprep.subr.bf16.mxu0 0
        %417 = vmatpush1.bf16.msra.mxu0 0
        %418 = vmatprep.subr.bf16.mxu0 0
        %419 = vmatpush1.bf16.msra.mxu0 0
        %420 = vmatprep.subr.bf16.mxu0 0
        %421 = vmatpush1.bf16.msra.mxu0 0
        %422 = vmatprep.subr.bf16.mxu0 0
        %423 = vmatpush1.bf16.msra.mxu0 0
        %424 = vmatprep.mubr.bf16.mxu0 0
        %425 = vmatmul.mubr.bf16.gmra.mrb[0].mxu0 %v390
        %v426 = vpop.f32.mrb[0].mxu0
        %v427 = vadd.f32 0.0, %v426
        %v428 = vpop.f32.mrb[0].mxu0
        %v429 = vpop.f32.mrb[0].mxu0
        %v430 = vpop.f32.mrb[0].mxu0
        %431 = vdwg.mxu0
        %v432 = vadd.f32 %v384, %v427
        %v433 = vxor.u32 %v432, 2147483648
        %v434 = vmul.f32 %v433, 1.442695
        %v435 = vpow.pop %v434
        %v436 = vadd.f32 %v435, 1.0
        %v437 = vrcp.pop %v436
        %v438 = vmul.f32 1.0, %v437
        %v439 = vtanh.pop %v432
        %v440 = vmul.f32 %v438, %v376
        %442 = vrot.lane.b32.xlu0 %v439, 32
        %v443 = vpop.permute.xlu0 %442
        %v445 = vmul.f32 %v438, %v443
        %447 = vrot.lane.b32.xlu0 %v445, 32
        %v448 = vpop.permute.xlu0 %447
        %v450 = vadd.f32 %v440, %v448
        %v451 = vtanh.pop %v450
        %453 = vrot.lane.b32.xlu0 %v451, 32
        %v454 = vpop.permute.xlu0 %453
        %v456 = vmul.f32 %v438, %v454
        %s457 = scalar_lea.vmem [#allocation2], 16
        %v458 = vld [vmem:[%s457] sm:$0xff]
        %v459 = vpack.c.bf16 %v456, %v456
        %461 = vrot.lane.b32.xlu0 %v459, 64
        %v462 = vpop.permute.xlu0 %461
        %v464 = vsel %vm224, %v462, 0
        %466 = vmatprep.subr.bf16.mxu0 0
        %467 = vmatpush1.bf16.msra.mxu0 %v307
        %468 = vmatprep.subr.bf16.mxu0 0
        %469 = vmatpush1.bf16.msra.mxu0 %v308
        %470 = vmatprep.subr.bf16.mxu0 0
        %471 = vmatpush1.bf16.msra.mxu0 0
        %472 = vmatprep.subr.bf16.mxu0 0
        %473 = vmatpush1.bf16.msra.mxu0 0
        %474 = vmatprep.subr.bf16.mxu0 0
        %475 = vmatpush1.bf16.msra.mxu0 0
        %476 = vmatprep.subr.bf16.mxu0 0
        %477 = vmatpush1.bf16.msra.mxu0 0
        %478 = vmatprep.subr.bf16.mxu0 0
        %479 = vmatpush1.bf16.msra.mxu0 0
        %480 = vmatprep.subr.bf16.mxu0 0
        %481 = vmatpush1.bf16.msra.mxu0 0
        %482 = vmatprep.subr.bf16.mxu0 0
        %483 = vmatpush1.bf16.msra.mxu0 0
        %484 = vmatprep.subr.bf16.mxu0 0
        %485 = vmatpush1.bf16.msra.mxu0 0
        %486 = vmatprep.subr.bf16.mxu0 0
        %487 = vmatpush1.bf16.msra.mxu0 0
        %488 = vmatprep.subr.bf16.mxu0 0
        %489 = vmatpush1.bf16.msra.mxu0 0
        %490 = vmatprep.subr.bf16.mxu0 0
        %491 = vmatpush1.bf16.msra.mxu0 0
        %492 = vmatprep.subr.bf16.mxu0 0
        %493 = vmatpush1.bf16.msra.mxu0 0
        %494 = vmatprep.subr.bf16.mxu0 0
        %495 = vmatpush1.bf16.msra.mxu0 0
        %496 = vmatprep.subr.bf16.mxu0 0
        %497 = vmatpush1.bf16.msra.mxu0 0
        %498 = vmatprep.mubr.bf16.mxu0 0
        %499 = vmatmul.mubr.bf16.gmra.mrb[0].mxu0 %v464
        %v500 = vpop.f32.mrb[0].mxu0
        %v501 = vadd.f32 0.0, %v500
        %v502 = vpop.f32.mrb[0].mxu0
        %v503 = vpop.f32.mrb[0].mxu0
        %v504 = vpop.f32.mrb[0].mxu0
        %505 = vdwg.mxu0
        %v506 = vadd.f32 %v458, %v501
        %v507 = vxor.u32 %v506, 2147483648
        %v508 = vmul.f32 %v507, 1.442695
        %v509 = vpow.pop %v508
        %v510 = vadd.f32 %v509, 1.0
        %v511 = vrcp.pop %v510
        %v512 = vmul.f32 1.0, %v511
        %v513 = vtanh.pop %v506
        %v514 = vmul.f32 %v512, %v450
        %516 = vrot.lane.b32.xlu0 %v513, 32
        %v517 = vpop.permute.xlu0 %516
        %v519 = vmul.f32 %v512, %v517
        %521 = vrot.lane.b32.xlu0 %v519, 32
        %v522 = vpop.permute.xlu0 %521
        %v524 = vadd.f32 %v514, %v522
        %v525 = vtanh.pop %v524
        %527 = vrot.lane.b32.xlu0 %v525, 32
        %v528 = vpop.permute.xlu0 %527
        %v530 = vmul.f32 %v512, %v528
        %s531 = scalar_lea.vmem [#allocation2], 24
        %v532 = vld [vmem:[%s531] sm:$0xff]
        %v533 = vpack.c.bf16 %v530, %v530
        %535 = vrot.lane.b32.xlu0 %v533, 64
        %v536 = vpop.permute.xlu0 %535
        %v538 = vsel %vm224, %v536, 0
        %540 = vmatprep.subr.bf16.mxu0 0
        %541 = vmatpush1.bf16.msra.mxu0 %v307
        %542 = vmatprep.subr.bf16.mxu0 0
        %543 = vmatpush1.bf16.msra.mxu0 %v308
        %544 = vmatprep.subr.bf16.mxu0 0
        %545 = vmatpush1.bf16.msra.mxu0 0
        %546 = vmatprep.subr.bf16.mxu0 0
        %547 = vmatpush1.bf16.msra.mxu0 0
        %548 = vmatprep.subr.bf16.mxu0 0
        %549 = vmatpush1.bf16.msra.mxu0 0
        %550 = vmatprep.subr.bf16.mxu0 0
        %551 = vmatpush1.bf16.msra.mxu0 0
        %552 = vmatprep.subr.bf16.mxu0 0
        %553 = vmatpush1.bf16.msra.mxu0 0
        %554 = vmatprep.subr.bf16.mxu0 0
        %555 = vmatpush1.bf16.msra.mxu0 0
        %556 = vmatprep.subr.bf16.mxu0 0
        %557 = vmatpush1.bf16.msra.mxu0 0
        %558 = vmatprep.subr.bf16.mxu0 0
        %559 = vmatpush1.bf16.msra.mxu0 0
        %560 = vmatprep.subr.bf16.mxu0 0
        %561 = vmatpush1.bf16.msra.mxu0 0
        %562 = vmatprep.subr.bf16.mxu0 0
        %563 = vmatpush1.bf16.msra.mxu0 0
        %564 = vmatprep.subr.bf16.mxu0 0
        %565 = vmatpush1.bf16.msra.mxu0 0
        %566 = vmatprep.subr.bf16.mxu0 0
        %567 = vmatpush1.bf16.msra.mxu0 0
        %568 = vmatprep.subr.bf16.mxu0 0
        %569 = vmatpush1.bf16.msra.mxu0 0
        %570 = vmatprep.subr.bf16.mxu0 0
        %571 = vmatpush1.bf16.msra.mxu0 0
        %572 = vmatprep.mubr.bf16.mxu0 0
        %573 = vmatmul.mubr.bf16.gmra.mrb[0].mxu0 %v538
        %v574 = vpop.f32.mrb[0].mxu0
        %v575 = vadd.f32 0.0, %v574
        %v576 = vpop.f32.mrb[0].mxu0
        %v577 = vpop.f32.mrb[0].mxu0
        %v578 = vpop.f32.mrb[0].mxu0
        %579 = vdwg.mxu0
        %v580 = vadd.f32 %v532, %v575
        %v581 = vxor.u32 %v580, 2147483648
        %v582 = vmul.f32 %v581, 1.442695
        %v583 = vpow.pop %v582
        %v584 = vadd.f32 %v583, 1.0
        %v585 = vrcp.pop %v584
        %v586 = vmul.f32 1.0, %v585
        %v587 = vtanh.pop %v580
        %v588 = vmul.f32 %v586, %v524
        %590 = vrot.lane.b32.xlu0 %v587, 32
        %v591 = vpop.permute.xlu0 %590
        %v593 = vmul.f32 %v586, %v591
        %595 = vrot.lane.b32.xlu0 %v593, 32
        %v596 = vpop.permute.xlu0 %595
        %v598 = vadd.f32 %v588, %v596
        %v599 = vtanh.pop %v598
        %601 = vrot.lane.b32.xlu0 %v599, 32
        %v602 = vpop.permute.xlu0 %601
        %v604 = vmul.f32 %v586, %v602
        %606 = vrot.lane.b32.xlu0 %v604, 64
        %v607 = vpop.permute.xlu0 %606
        %609 = vst.msk [vmem:[#allocation3] sm:$0xff] %vm224, %v607
        %611 = vrot.lane.b32.xlu0 %v598, 96
        %v612 = vpop.permute.xlu0 %611
        %614 = vst.msk [vmem:[%s295] sm:$0xff] %vm224, %v612
        // Predicated region
        $region41: #{tpu_custom_call.1} parent=35 // pred_check
          %p615 = pneg %p118
        $region42: #{tpu_custom_call.1} parent=35 // pred_check_branch
          %617 = sbr.rel (%p615) target = $region44
        $region43: #{tpu_custom_call.1} parent=35 // pred_region
          %s619 = ssub.s32 256, 256
          %620 = vsyncadd [#allocation4], %s619
          %s621 = sshll.u32 [#allocation3], 4
          %s622 = int_to_ptr.vmem [resolvable:$true] %s621
          %627 = dma.vmem_to_hbm [thread:$0]  %s622, 256, %s4, [#allocation4], 128, 128, 8
        $region44: #{tpu_custom_call.1} parent=35 // pred_fallthru
          _
        // Predicated region
        $region45: #{tpu_custom_call.1} parent=35 // pred_check
          %p628 = pneg %p118
        $region46: #{tpu_custom_call.1} parent=35 // pred_check_branch
          %630 = sbr.rel (%p628) target = $region48
        $region47: #{tpu_custom_call.1} parent=35 // pred_region
          %631 = dma.done [#allocation4], 256
        $region48: #{tpu_custom_call.1} parent=35 // pred_fallthru
          _
      $region36: #{tpu_custom_call.1} parent=5 // pred_fallthru
        _
      %p632 = scmp.le.s32.totalorder 2, %s11
      // Predicated region
      $region49: #{tpu_custom_call.1} parent=5 // pred_check
        %p633 = pneg %p632
      $region50: #{tpu_custom_call.1} parent=5 // pred_check_branch
        %635 = sbr.rel (%p633) target = $region52
      $region51: #{tpu_custom_call.1} parent=5 // pred_region
        %s636 = ssub.s32 %s11, 2
      $region52: #{tpu_custom_call.1} parent=5 // pred_fallthru
        _
    $region6: #{tpu_custom_call.1} parent=1 // loop_footer
      %s15 = sadd.s32 1, %s11
    $region7: #{tpu_custom_call.1} parent=1 // loop_footer_branch
      %10 = sbr.rel target = $region3
    $region8: #{tpu_custom_call.1} parent=1 // loop_exit
      _
    %637 = vsyncpa [#allocation4], 1
    %s638 = scalar_lea.sflag [#allocation4], 1
    %639 = vsyncpa %s638, 1

</llo_original>
